<compile_context>
chip_gen: v5e
topology: v5e:2x2
jax: 0.10.0
libtpu: 0.0.40
codegen_flags: <defaults>
</compile_context>

<pallas_src>
import jax
import jax.numpy as jnp
from jax import lax
from jax.experimental import pallas as pl
from jax.experimental.pallas import tpu as pltpu


def _round_up(n, m):
    return ((n + m - 1) // m) * m


def decoder_kernel(xh_ref, c0_ref, wxh_ref, wfcb_ref, packed_ref):
    """One-step bias-free LSTM cell + Linear head, fully VMEM/vreg resident.

    xh_ref:     (B, I+H)   concat([x, h_0], -1)  (built in wrapper)
    c0_ref:     (B, H)     previous cell state
    wxh_ref:    (I+H, 4H)  stacked [w_ih; w_hh], gate order [i, f, g, o]
    wfcb_ref:   (H+1, O)   [fc weight (H,O); fc bias (1,O)]
    packed_ref: (B, P)     lane-dense output slab:
                           lanes [0,O)=fc(h1), [O,O+H)=h1, [O+H,O+2H)=c1, rest 0
    """
    H = c0_ref.shape[-1]
    O = wfcb_ref.shape[-1]
    B = xh_ref.shape[0]

    # Single stacked-gate pre-activation: one MXU push for all four gates.
    pre = jnp.dot(xh_ref[...], wxh_ref[...], preferred_element_type=jnp.float32)

    # One tanh pass over the whole (B, 4H) tile.  For the non-g lanes use
    # sigmoid(x) = 0.5 * tanh(x / 2) + 0.5; the "g" gate lanes [2H, 3H) get a
    # plain tanh.  Lane selection is a cheap VPU compare/select.
    lane = lax.broadcasted_iota(jnp.int32, pre.shape, 1)
    is_g = (lane >= 2 * H) & (lane < 3 * H)
    t = jnp.tanh(jnp.where(is_g, pre, 0.5 * pre))
    act = jnp.where(is_g, t, 0.5 * t + 0.5)

    i_g = act[:, 0:H]
    f_g = act[:, H:2 * H]
    g_g = act[:, 2 * H:3 * H]
    o_g = act[:, 3 * H:4 * H]

    c1 = f_g * c0_ref[...] + i_g * g_g
    h1 = o_g * jnp.tanh(c1)

    # fc(h1): weight rows [0, H), bias row H (broadcast over the batch).
    fc_out = (jnp.dot(h1, wfcb_ref[0:H, :], preferred_element_type=jnp.float32)
              + wfcb_ref[H:H + 1, :])

    # Pack everything into one lane-dense slab and do one full-width store.
    pad = packed_ref.shape[-1] - (O + 2 * H)
    pieces = [fc_out, h1, c1]
    if pad > 0:
        pieces.append(jnp.zeros((B, pad), jnp.float32))
    packed_ref[...] = jnp.concatenate(pieces, axis=-1)


def decoder_forward(x, encoder_hidden, params):
    """x: (B, input_dim); encoder_hidden: (h_0, c_0), each (1, B, hid_dim).

    Returns (output, (h_n, c_n)) like the PyTorch module, with h_n/c_n shaped
    (n_layers=1, B, hid_dim).
    """
    h0, c0 = encoder_hidden
    h0 = h0[0]                       # (B, H)   layout plumbing only
    c0 = c0[0]                       # (B, H)
    B = x.shape[0]
    H = h0.shape[-1]
    O = params["w_fcb"].shape[-1]
    pack_w = _round_up(O + 2 * H, 128)   # lane-dense output slab width

    # Wrapper-side concat (NOT in-kernel) so the kernel sees one contiguous
    # operand and does a single MXU push.
    xh = jnp.concatenate([x, h0], axis=-1)            # (B, I+H)

    vmem = pl.BlockSpec(memory_space=pltpu.MemorySpace.VMEM)

    packed = pl.pallas_call(
        decoder_kernel,
        out_shape=jax.ShapeDtypeStruct((B, pack_w), jnp.float32),
        in_specs=[vmem, vmem, vmem, vmem],
        out_specs=vmem,
    )(xh, c0, params["w_xh"], params["w_fcb"])

    out = packed[:, 0:O]
    h_n = packed[:, O:O + H]
    c_n = packed[:, O + H:O + 2 * H]
    return out, (h_n[None], c_n[None])


def init_params(key, input_dim, hid_dim, output_dim):
    """Synthetic params mirroring PyTorch shapes, stored pre-stacked /
    pre-transposed for the fused kernel:

      PyTorch weight_ih_l0: (4H, I) -> w_ih: (I, 4H)   (gate order i, f, g, o)
      PyTorch weight_hh_l0: (4H, H) -> w_hh: (H, 4H)
        -> w_xh = concat([w_ih; w_hh], axis=0): (I+H, 4H)
      (LSTM has bias=False in the module -> no LSTM biases)
      PyTorch fc.weight: (O, H) -> w_fc: (H, O);  fc.bias: (O,) -> b_fc: (1, O)
        -> w_fcb = concat([w_fc; b_fc], axis=0): (H+1, O)
    """
    k = 1.0 / jnp.sqrt(jnp.float32(hid_dim))
    ks = jax.random.split(key, 4)
    w_ih = jax.random.uniform(ks[0], (input_dim, 4 * hid_dim), jnp.float32, -k, k)
    w_hh = jax.random.uniform(ks[1], (hid_dim, 4 * hid_dim), jnp.float32, -k, k)
    w_fc = jax.random.uniform(ks[2], (hid_dim, output_dim), jnp.float32, -k, k)
    b_fc = jax.random.uniform(ks[3], (1, output_dim), jnp.float32, -k, k)
    w_xh = jnp.concatenate([w_ih, w_hh], axis=0)          # (I+H, 4H)
    w_fcb = jnp.concatenate([w_fc, b_fc], axis=0)         # (H+1, O)
    return dict(w_xh=w_xh, w_fcb=w_fcb)


def reference_forward(x, encoder_hidden, p):
    """Pure-JAX reference matching PyTorch LSTM(bias=False, 1 step) + Linear,
    using the canonical per-gate sigmoid/tanh formulation."""
    h0, c0 = encoder_hidden
    h0, c0 = h0[0], c0[0]
    H = h0.shape[-1]
    hp = lax.Precision.HIGHEST
    pre = jnp.dot(jnp.concatenate([x, h0], axis=-1), p["w_xh"], precision=hp)
    i_g = jax.nn.sigmoid(pre[:, 0:H])
    f_g = jax.nn.sigmoid(pre[:, H:2 * H])
    g_g = jnp.tanh(pre[:, 2 * H:3 * H])
    o_g = jax.nn.sigmoid(pre[:, 3 * H:4 * H])
    c1 = f_g * c0 + i_g * g_g
    h1 = o_g * jnp.tanh(c1)
    out = jnp.dot(h1, p["w_fcb"][:H, :], precision=hp) + p["w_fcb"][H:H + 1, :]
    return out, h1, c1


if __name__ == "__main__":
    # Small shapes consistent with the module's forward:
    #   x: (batch, input_dim); encoder_hidden: ((1, batch, hid_dim), (1, batch, hid_dim))
    batch = 8
    input_dim = 16
    hid_dim = 32          # 4 * hid_dim == 128 -> one lane width for the fused gates
    output_dim = 16

    key = jax.random.PRNGKey(0)
    kx, kh, kc, kp = jax.random.split(key, 4)
    x = jax.random.normal(kx, (batch, input_dim), jnp.float32)
    h_0 = jax.random.normal(kh, (1, batch, hid_dim), jnp.float32)
    c_0 = jax.random.normal(kc, (1, batch, hid_dim), jnp.float32)
    params = init_params(kp, input_dim, hid_dim, output_dim)

    out, (h_n, c_n) = decoder_forward(x, (h_0, c_0), params)
    out, h_n, c_n = jax.block_until_ready((out, h_n, c_n))

    ref_out, ref_h, ref_c = reference_forward(x, (h_0, c_0), params)

    assert out.shape == (batch, output_dim)
    assert h_n.shape == (1, batch, hid_dim) and c_n.shape == (1, batch, hid_dim)
    assert jnp.allclose(out, ref_out, atol=1e-3, rtol=1e-3), (
        f"output max abs err {jnp.max(jnp.abs(out - ref_out))}")
    assert jnp.allclose(h_n[0], ref_h, atol=1e-3, rtol=1e-3), (
        f"h_n max abs err {jnp.max(jnp.abs(h_n[0] - ref_h))}")
    assert jnp.allclose(c_n[0], ref_c, atol=1e-3, rtol=1e-3), (
        f"c_n max abs err {jnp.max(jnp.abs(c_n[0] - ref_c))}")

    print("KERNEL_OK")
</pallas_src>

<mosaic_0001>
module attributes {stable_mosaic.version = 11 : i64} {
  func.func @decoder_kernel(%arg0: memref<8x48xf32, #tpu.memory_space<vmem>>, %arg1: memref<8x32xf32, #tpu.memory_space<vmem>>, %arg2: memref<48x128xf32, #tpu.memory_space<vmem>>, %arg3: memref<33x16xf32, #tpu.memory_space<vmem>>, %arg4: memref<8x128xf32, #tpu.memory_space<vmem>>) attributes {dimension_semantics = [], scalar_prefetch = 0 : i64, scratch_operands = 0 : i64, tpu.core_type = #tpu.core_type<tc>} {
    %c0 = arith.constant 0 : index
    %c0_0 = arith.constant 0 : index
    %0 = vector.load %arg0[%c0, %c0_0] : memref<8x48xf32, #tpu.memory_space<vmem>>, vector<8x48xf32>
    %c0_1 = arith.constant 0 : index
    %c0_2 = arith.constant 0 : index
    %1 = vector.load %arg2[%c0_1, %c0_2] : memref<48x128xf32, #tpu.memory_space<vmem>>, vector<48x128xf32>
    %cst = arith.constant dense<0.000000e+00> : vector<8x128xf32>
    %2 = tpu.matmul %0, %1, %cst {dimension_numbers = #tpu.dot_dimension_numbers<[1], [0], [0], [1], [0, 0, 1, 1], [], []>} : vector<8x48xf32>, vector<48x128xf32>, vector<8x128xf32> -> vector<8x128xf32>
    %3 = tpu.iota {dimensions = array<i32: 1>} : vector<8x128xi32>
    %c64_i32 = arith.constant 64 : i32
    %4 = vector.broadcast %c64_i32 : i32 to vector<8x128xi32>
    %5 = arith.cmpi sge, %3, %4 : vector<8x128xi32>
    %c96_i32 = arith.constant 96 : i32
    %6 = vector.broadcast %c96_i32 : i32 to vector<8x128xi32>
    %7 = arith.cmpi slt, %3, %6 : vector<8x128xi32>
    %8 = arith.andi %5, %7 : vector<8x128xi1>
    %cst_3 = arith.constant 5.000000e-01 : f32
    %9 = vector.broadcast %cst_3 : f32 to vector<8x128xf32>
    %10 = arith.mulf %9, %2 : vector<8x128xf32>
    %11 = arith.select %8, %2, %10 : vector<8x128xi1>, vector<8x128xf32>
    %12 = math.tanh %11 : vector<8x128xf32>
    %cst_4 = arith.constant 5.000000e-01 : f32
    %13 = vector.broadcast %cst_4 : f32 to vector<8x128xf32>
    %14 = arith.mulf %13, %12 : vector<8x128xf32>
    %cst_5 = arith.constant 5.000000e-01 : f32
    %15 = vector.broadcast %cst_5 : f32 to vector<8x128xf32>
    %16 = arith.addf %14, %15 : vector<8x128xf32>
    %17 = arith.select %8, %12, %16 : vector<8x128xi1>, vector<8x128xf32>
    %18 = vector.extract_strided_slice %17 {offsets = [0, 0], sizes = [8, 32], strides = [1, 1]} : vector<8x128xf32> to vector<8x32xf32>
    %19 = vector.extract_strided_slice %17 {offsets = [0, 32], sizes = [8, 32], strides = [1, 1]} : vector<8x128xf32> to vector<8x32xf32>
    %20 = vector.extract_strided_slice %17 {offsets = [0, 64], sizes = [8, 32], strides = [1, 1]} : vector<8x128xf32> to vector<8x32xf32>
    %21 = vector.extract_strided_slice %17 {offsets = [0, 96], sizes = [8, 32], strides = [1, 1]} : vector<8x128xf32> to vector<8x32xf32>
    %c0_6 = arith.constant 0 : index
    %c0_7 = arith.constant 0 : index
    %22 = vector.load %arg1[%c0_6, %c0_7] : memref<8x32xf32, #tpu.memory_space<vmem>>, vector<8x32xf32>
    %23 = arith.mulf %19, %22 : vector<8x32xf32>
    %24 = arith.mulf %18, %20 : vector<8x32xf32>
    %25 = arith.addf %23, %24 : vector<8x32xf32>
    %26 = math.tanh %25 : vector<8x32xf32>
    %27 = arith.mulf %21, %26 : vector<8x32xf32>
    %c0_8 = arith.constant 0 : index
    %c0_9 = arith.constant 0 : index
    %28 = vector.load %arg3[%c0_8, %c0_9] : memref<33x16xf32, #tpu.memory_space<vmem>>, vector<32x16xf32>
    %cst_10 = arith.constant dense<0.000000e+00> : vector<8x16xf32>
    %29 = tpu.matmul %27, %28, %cst_10 {dimension_numbers = #tpu.dot_dimension_numbers<[1], [0], [0], [1], [0, 0, 1, 1], [], []>} : vector<8x32xf32>, vector<32x16xf32>, vector<8x16xf32> -> vector<8x16xf32>
    %c32 = arith.constant 32 : index
    %c0_11 = arith.constant 0 : index
    %30 = vector.load %arg3[%c32, %c0_11] : memref<33x16xf32, #tpu.memory_space<vmem>>, vector<1x16xf32>
    %31 = vector.broadcast %30 : vector<1x16xf32> to vector<8x16xf32>
    %32 = arith.addf %29, %31 : vector<8x16xf32>
    %cst_12 = arith.constant 0.000000e+00 : f32
    %33 = vector.broadcast %cst_12 : f32 to vector<8x48xf32>
    %34 = tpu.concatenate %32, %27, %25, %33 in 1 : vector<8x16xf32>, vector<8x32xf32>, vector<8x32xf32>, vector<8x48xf32> -> vector<8x128xf32>
    %c0_13 = arith.constant 0 : index
    %c0_14 = arith.constant 0 : index
    %35 = vector.load %arg4[%c0_13, %c0_14] : memref<8x128xf32, #tpu.memory_space<vmem>>, vector<8x128xf32>
    tpu.vector_store %arg4[%c0_13, %c0_14], %34 {strides = array<i32>} : memref<8x128xf32, #tpu.memory_space<vmem>>, vector<8x128xf32>,
    return
  }
}

</mosaic_0001>

<llo_original>
// kernel: tpu_custom_call.1
$region0: #{tpu_custom_call.1}
  #allocation0 [shape = 'u32[]', space=smem, size = 0x4, offset = 0x4, fixed_abs, tag = 'smem constant byte address 0x4 - core index']
  #allocation1 [shape = 'u32[72,128]{1,0:T(1,128)}', space=vmem, size = 0x9000, scoped, tag = 'internal scratch']
  %s0 = inlined_call_operand.vmem [shape: f32[8,48], index: 0, kind: input, shape index: {}]
  %s1 = inlined_call_operand.hbm [shape: f32[8,32], index: 1, kind: input, shape index: {}]
  %s2 = inlined_call_operand.vmem [shape: f32[48,128], index: 2, kind: input, shape index: {}]
  %s3 = inlined_call_operand.vmem [shape: f32[33,16], index: 3, kind: input, shape index: {}]
  %s4 = inlined_call_operand.hbm [shape: f32[8,128], index: 4, kind: output, shape index: {}]
  %s5 = sld [smem:[#allocation0]]
  $region30: #{tpu_custom_call.1} parent=0
    _
  %s7 = ssub.s32 1, %s5
  %s8 = scalar_select 0, %s7, %s5
  $region1: #{tpu_custom_call.1} parent=0
    #allocation2 [shape = 'u8[4096]{0}', space=vmem, size = 0x1000, scoped, tag = 'input window, operand 1, single buffered']
    #allocation3 [shape = 's32[1]{0}', space=sflag, size = 0x4, scoped, tag = 'scoped memory for tpu_custom_call.1']
    #allocation4 [shape = 's32[1]{0}', space=sflag, size = 0x4, scoped, tag = 'scoped memory for tpu_custom_call.1']
    #allocation5 [shape = 'u8[4096]{0}', space=vmem, size = 0x1000, scoped, tag = 'output window, operand 0, single buffered']
    %9 = vsyncpa [#allocation3], 0
    %10 = vsyncpa [#allocation4], 0
    // Predicated region
    $region2: #{tpu_custom_call.1} parent=1 // pred_check
      _
    $region3: #{tpu_custom_call.1} parent=1 // pred_check_branch
      %12 = sbr.rel (0) target = $region5
    $region4: #{tpu_custom_call.1} parent=1 // pred_region
      _
    $region5: #{tpu_custom_call.1} parent=1 // pred_fallthru
      _
    // Predicated region
    $region6: #{tpu_custom_call.1} parent=1 // pred_check
      _
    $region7: #{tpu_custom_call.1} parent=1 // pred_check_branch
      %14 = sbr.rel (0) target = $region9
    $region8: #{tpu_custom_call.1} parent=1 // pred_region
      %16 = vsyncadd [#allocation3], 0
      %s18 = sshll.u32 %s1, 4
      %s19 = int_to_ptr.hbm [resolvable:$true] %s18
      %s20 = sshll.u32 [#allocation2], 4
      %s21 = int_to_ptr.vmem [resolvable:$true] %s20
      %23 = dma.hbm_to_vmem [thread:$0]  %s19, 128, %s21, [#allocation3]
    $region9: #{tpu_custom_call.1} parent=1 // pred_fallthru
      _
    // Predicated region
    $region10: #{tpu_custom_call.1} parent=1 // pred_check
      _
    $region11: #{tpu_custom_call.1} parent=1 // pred_check_branch
      %25 = sbr.rel (0) target = $region13
    $region12: #{tpu_custom_call.1} parent=1 // pred_region
      _
    $region13: #{tpu_custom_call.1} parent=1 // pred_fallthru
      _
    // Predicated region
    $region14: #{tpu_custom_call.1} parent=1 // pred_check
      _
    $region15: #{tpu_custom_call.1} parent=1 // pred_check_branch
      %27 = sbr.rel (0) target = $region17
    $region16: #{tpu_custom_call.1} parent=1 // pred_region
      _
    $region17: #{tpu_custom_call.1} parent=1 // pred_fallthru
      _
    // Predicated region
    $region18: #{tpu_custom_call.1} parent=1 // pred_check
      _
    $region19: #{tpu_custom_call.1} parent=1 // pred_check_branch
      %29 = sbr.rel (0) target = $region21
    $region20: #{tpu_custom_call.1} parent=1 // pred_region
      %31 = dma.done [#allocation3], 128
    $region21: #{tpu_custom_call.1} parent=1 // pred_fallthru
      _
    %v32 = vld [vmem:[%s0] sm:$0xff]
    %v33 = vld [vmem:[%s2] sm:$0xff]
    %v34 = vld [vmem:[%s2 + $0x8] sm:$0xff]
    %v35 = vld [vmem:[%s2 + $0x10] sm:$0xff]
    %v36 = vld [vmem:[%s2 + $0x18] sm:$0xff]
    %v37 = vld [vmem:[%s2 + $0x20] sm:$0xff]
    %v38 = vld [vmem:[%s2 + $0x28] sm:$0xff]
    %vm39 = vcmask 392192
    %v41 = vsel %vm39, %v32, 0
    %43 = vmatpush.msra.mxu0 0.0
    %44 = vmatpush.msra.mxu0 0.0
    %45 = vmatpush.msra.mxu0 0.0
    %46 = vmatpush.msra.mxu0 0.0
    %47 = vmatpush.msra.mxu0 0.0
    %48 = vmatpush.msra.mxu0 0.0
    %49 = vmatpush.msra.mxu0 0.0
    %50 = vmatpush.msra.mxu0 0.0
    %51 = vmatpush.msra.mxu0 0.0
    %52 = vmatpush.msra.mxu0 0.0
    %53 = vmatpush.msra.mxu0 %v38
    %54 = vmatpush.msra.mxu0 %v37
    %55 = vmatpush.msra.mxu0 %v36
    %56 = vmatpush.msra.mxu0 %v35
    %57 = vmatpush.msra.mxu0 %v34
    %58 = vmatpush.msra.mxu0 %v33
    %59 = vmatmul.f32.gmra.mxu0 %v41
    %v60 = vpop.f32.mrf.mxu0
    %v61 = vadd.f32 0.0, %v60
    %62 = vdwg.mxu0
    %v63 = vlaneseq
    %v64 = vand.u32 %v63, 127
    %vm65 = vcmp.ge.s32.totalorder %v64, 64
    %vm66 = vcmp.lt.s32.totalorder %v64, 96
    %vm67 = vmand %vm65, %vm66
    %v68 = vmul.f32 %v61, 0.5
    %v69 = vsel %vm67, %v61, %v68
    %v70 = vtanh.pop %v69
    %v71 = vmul.f32 %v70, 0.5
    %v72 = vadd.f32 %v71, 0.5
    %v73 = vsel %vm67, %v70, %v72
    %v74 = vld [vmem:[#allocation2] sm:$0xff]
    %76 = vrot.lane.b32.xlu0 %v74, 32
    %v77 = vpop.permute.xlu0 %76
    %v79 = vmul.f32 %v73, %v77
    %81 = vrot.lane.b32.xlu0 %v73, 64
    %v82 = vpop.permute.xlu0 %81
    %v84 = vmul.f32 %v73, %v82
    %86 = vrot.lane.b32.xlu0 %v84, 32
    %v87 = vpop.permute.xlu0 %86
    %v89 = vadd.f32 %v79, %v87
    %v90 = vtanh.pop %v89
    %92 = vrot.lane.b32.xlu0 %v90, 64
    %v93 = vpop.permute.xlu0 %92
    %v95 = vmul.f32 %v73, %v93
    %v96 = vld [vmem:[%s3] sm:$0xff]
    %v97 = vld [vmem:[%s3 + $0x8] sm:$0xff]
    %v98 = vld [vmem:[%s3 + $0x10] sm:$0xff]
    %v99 = vld [vmem:[%s3 + $0x18] sm:$0xff]
    %v100 = vld [vmem:[%s3 + $0x20] sm:$0x1]
    %v101 = vperm.slane %v100, 0
    %103 = vrot.lane.b32.xlu0 %v95, 32
    %v104 = vpop.permute.xlu0 %103
    %vm105 = vcmask 261120
    %v106 = vsel %vm105, %v104, 0
    %108 = vmatpush.msra.mxu0 0.0
    %109 = vmatpush.msra.mxu0 0.0
    %110 = vmatpush.msra.mxu0 0.0
    %111 = vmatpush.msra.mxu0 0.0
    %112 = vmatpush.msra.mxu0 0.0
    %113 = vmatpush.msra.mxu0 0.0
    %114 = vmatpush.msra.mxu0 0.0
    %115 = vmatpush.msra.mxu0 0.0
    %116 = vmatpush.msra.mxu0 0.0
    %117 = vmatpush.msra.mxu0 0.0
    %118 = vmatpush.msra.mxu0 0.0
    %119 = vmatpush.msra.mxu0 0.0
    %120 = vmatpush.msra.mxu0 %v99
    %121 = vmatpush.msra.mxu0 %v98
    %122 = vmatpush.msra.mxu0 %v97
    %123 = vmatpush.msra.mxu0 %v96
    %124 = vmatmul.f32.gmra.mxu0 %v106
    %v125 = vpop.f32.mrf.mxu0
    %v126 = vadd.f32 %v101, %v125
    %127 = vdwg.mxu0
    %128 = vrot.lane.b32.xlu0 %v95, 48
    %v129 = vpop.permute.xlu0 %128
    %132 = vrot.lane.b32.xlu0 %v89, 16
    %v133 = vpop.permute.xlu0 %132
    %vm135 = vcmask 130048
    %v136 = vsel %vm135, %v126, %v129
    %v137 = vsel %vm39, %v136, %v133
    %vm138 = vcmask 654336
    %v139 = vsel %vm138, %v137, 0.0
    %140 = vst [vmem:[#allocation5] sm:$0xff] %v139
    // Predicated region
    $region22: #{tpu_custom_call.1} parent=1 // pred_check
      _
    $region23: #{tpu_custom_call.1} parent=1 // pred_check_branch
      %142 = sbr.rel (0) target = $region25
    $region24: #{tpu_custom_call.1} parent=1 // pred_region
      %144 = vsyncadd [#allocation4], 0
      %s146 = sshll.u32 [#allocation5], 4
      %s147 = int_to_ptr.vmem [resolvable:$true] %s146
      %s148 = sshll.u32 %s4, 4
      %s149 = int_to_ptr.hbm [resolvable:$true] %s148
      %151 = dma.vmem_to_hbm [thread:$0]  %s147, 128, %s149, [#allocation4]
    $region25: #{tpu_custom_call.1} parent=1 // pred_fallthru
      _
    // Predicated region
    $region26: #{tpu_custom_call.1} parent=1 // pred_check
      _
    $region27: #{tpu_custom_call.1} parent=1 // pred_check_branch
      %153 = sbr.rel (0) target = $region29
    $region28: #{tpu_custom_call.1} parent=1 // pred_region
      %155 = dma.done [#allocation4], 128
    $region29: #{tpu_custom_call.1} parent=1 // pred_fallthru
      _
    %156 = vsyncpa [#allocation3], 1
    %157 = vsyncpa [#allocation4], 1

</llo_original>
